<compile_context>
chip_gen: v6e
topology: v6e:2x2x1
jax: 0.10.0
libtpu: 0.0.40
codegen_flags: <defaults>
</compile_context>

<pallas_src>
import jax
import jax.numpy as jnp
from jax import lax
from jax.experimental import pallas as pl
from jax.experimental.pallas import tpu as pltpu


# VMEM budgets (bytes). Conservative for v7x (64 MiB physical / 32 MiB scoped
# default); v5e/v6e have 128 MiB so these are safe everywhere.
_STREAM_BUDGET = 2 * 1024 * 1024     # target x bytes per pipeline buffer
_TOTAL_BUDGET = 24 * 1024 * 1024     # target total in-kernel working set
_VMEM_LIMIT = 40 * 1024 * 1024       # raised scoped-VMEM limit


def _round_up(n, m):
    return ((n + m - 1) // m) * m


def _make_milnet_kernel(fi, num_mlp_layers, pz_valid, pz_padded):
    """Builds the fused MILNet kernel for a fixed MLP depth / instance count."""
    mask_needed = pz_valid != pz_padded

    def kernel(x_ref, wv_ref, bv_ref, wu_ref, bu_ref, ww_ref, *rest):
        mlp_refs = rest[:2 * num_mlp_layers]
        out_ref = rest[2 * num_mlp_layers]
        f32 = jnp.float32

        x3 = x_ref[...]                                     # (B, pz_pad, fz), stream dtype
        b, p, f = x3.shape
        x2 = x3.reshape(b * p, f)                           # pure sublane merge (p % 8 == 0)

        # attention_V / attention_U: two matmuls sharing x2 (bf16 operands on
        # the MXU, f32 accumulation); elementwise gate math in f32.
        hv = jnp.dot(x2, wv_ref[...], preferred_element_type=f32) + bv_ref[...]
        hu = jnp.dot(x2, wu_ref[...], preferred_element_type=f32) + bu_ref[...]
        gate = jnp.tanh(hv) * jax.nn.sigmoid(hu)            # (B*pz, fi) f32

        # Attention logits. bw dropped: softmax(a + c) == softmax(a).
        att = jnp.dot(gate.astype(ww_ref.dtype), ww_ref[...],
                      preferred_element_type=f32)           # (B*pz, 1)
        att3 = att.reshape(b, p, 1)                         # (B, pz_pad, 1)

        if mask_needed:
            inst = lax.broadcasted_iota(jnp.int32, (b, p, 1), 1)
            att3 = jnp.where(inst < pz_valid, att3, jnp.float32(-1e30))

        # Per-bag softmax over the instance (sublane) axis.
        m = jnp.max(att3, axis=1, keepdims=True)            # (B, 1, 1)
        e = jnp.exp(att3 - m)                               # (B, pz_pad, 1)
        denom = jnp.sum(e, axis=1, keepdims=True)           # (B, 1, 1)
        wgt = e * pl.reciprocal(denom, approx=True)         # (B, pz_pad, 1) f32

        # Fused attention pooling: torch.bmm(weight, x).squeeze(1).
        # Product in the stream dtype (no f32 copy of the x block); accumulate
        # the sublane reduction in f32.
        prod = wgt.astype(x3.dtype) * x3                    # (B, pz_pad, fz)
        feat = jnp.sum(prod, axis=1, dtype=f32)             # (B, fz) f32

        # Classifier MLP (kept in f32: tiny weights, negligible traffic).
        # TODO(synk): nn.Dropout is identity at inference; training-mode dropout
        # (random masking) is not implemented in the kernel.
        act = feat
        for layer in range(num_mlp_layers):
            w_ref = mlp_refs[2 * layer]
            b_ref = mlp_refs[2 * layer + 1]
            act = (jnp.dot(act, w_ref[...], preferred_element_type=f32)
                   + b_ref[...])
            if layer < num_mlp_layers - 1:
                act = jnp.maximum(act, 0.0)                  # ReLU

        # TODO(synk): for very large bag_block a lane-dense (num_classes, B)
        # output layout would avoid masked narrow-lane stores; output bytes are
        # tiny so this is left as-is.
        out_ref[...] = act.astype(out_ref.dtype)

    return kernel


def milnet_forward(x, wv, bv, wu, bu, ww, mlp_params, stream_dtype=jnp.bfloat16):
    """MILNet forward. x: (bz, pz, fz) -> logits (bz, num_classes)."""
    bz, pz, fz = x.shape
    fi = wv.shape[1]
    num_mlp_layers = len(mlp_params)
    num_classes = mlp_params[-1][0].shape[1]
    out_dtype = x.dtype

    # Stream x (and the attention matmul operands) in the stream dtype; biases
    # and the MLP stay f32.
    x_s = x.astype(stream_dtype)
    wv_s = wv.astype(stream_dtype)                           # (fz, fi)
    wu_s = wu.astype(stream_dtype)                           # (fz, fi)
    ww_s = ww.reshape(fi, 1).astype(stream_dtype)            # (fi, 1)
    bv2 = bv.reshape(1, fi).astype(jnp.float32)
    bu2 = bu.reshape(1, fi).astype(jnp.float32)

    mlp_flat = []
    for w, b in mlp_params:
        mlp_flat.append(w.astype(jnp.float32))               # (in, out)
        mlp_flat.append(b.reshape(1, -1).astype(jnp.float32))  # (1, out)

    # Pad the instance axis to a multiple of 8 so the in-kernel reshape
    # (B, pz, fz) -> (B*pz, fz) is a pure sublane merge. Padded instances are
    # masked with -inf logits inside the kernel.
    pz_pad = _round_up(pz, 8)
    if pz_pad != pz:
        x_s = jnp.pad(x_s, ((0, 0), (0, pz_pad - pz), (0, 0)))

    # --- bag_block from a VMEM byte budget (not an MXU row target) -----------
    itemsize = jnp.dtype(stream_dtype).itemsize
    per_bag_stream = pz_pad * fz * itemsize                  # one x buffer, per bag
    # rough f32 working set per bag (hv, hu, gate, softmax temps, pooling prod)
    per_bag_work = pz_pad * (3 * fi + fz + 8) * 4
    bag_block = min(_STREAM_BUDGET // max(1, per_bag_stream),
                    _TOTAL_BUDGET // max(1, 2 * per_bag_stream + per_bag_work))
    bag_block = max(8, (bag_block // 8) * 8)
    # TODO(synk): for very large pz (per-bag bytes beyond the budget), tile the
    # instance axis with an online softmax instead of keeping the bag resident.

    if bag_block >= bz:
        if bz >= 16:
            # Split into 2 balanced, 8-aligned blocks so both v7x TensorCores
            # get work via the "parallel" grid axis.
            bag_block = _round_up(pl.cdiv(bz, 2), 8)
            n_blocks = 2
        else:
            bag_block = bz
            n_blocks = 1
    else:
        n_blocks = pl.cdiv(bz, bag_block)
    bz_pad = n_blocks * bag_block
    if bz_pad != bz:
        x_s = jnp.pad(x_s, ((0, bz_pad - bz), (0, 0), (0, 0)))

    def full(a):
        nd = a.ndim
        return pl.BlockSpec(a.shape, lambda i: (0,) * nd)

    kernel = _make_milnet_kernel(fi, num_mlp_layers, pz, pz_pad)

    weight_args = (wv_s, bv2, wu_s, bu2, ww_s)
    mlp_flops = sum(2 * w.shape[0] * w.shape[1] for w, _ in mlp_params)
    cost = pl.CostEstimate(
        flops=bz * pz * (4 * fz * fi + 2 * fi + 2 * fz) + bz * mlp_flops,
        transcendentals=bz * pz * (2 * fi + 1),
        bytes_accessed=(x_s.size * itemsize
                        + bz_pad * num_classes * jnp.dtype(out_dtype).itemsize
                        + sum(int(a.size) * a.dtype.itemsize
                              for a in (list(weight_args) + mlp_flat))),
    )

    out = pl.pallas_call(
        kernel,
        out_shape=jax.ShapeDtypeStruct((bz_pad, num_classes), out_dtype),
        grid_spec=pltpu.PrefetchScalarGridSpec(
            num_scalar_prefetch=0,
            grid=(n_blocks,),
            in_specs=[pl.BlockSpec((bag_block, pz_pad, fz), lambda i: (i, 0, 0))]
                     + [full(a) for a in weight_args]
                     + [full(a) for a in mlp_flat],
            out_specs=pl.BlockSpec((bag_block, num_classes), lambda i: (i, 0)),
        ),
        compiler_params=pltpu.CompilerParams(
            dimension_semantics=("parallel",),
            vmem_limit_bytes=_VMEM_LIMIT),
        cost_estimate=cost,
    )(x_s, *weight_args, *mlp_flat)
    return out[:bz]


milnet_forward = jax.jit(milnet_forward, static_argnames=("stream_dtype",))


def milnet_reference(x, wv, bv, wu, bu, ww, bw, mlp_params):
    """Pure-JAX reference mirroring the PyTorch MILNet.forward (eval mode)."""
    bz, pz, fz = x.shape
    xf = x.reshape(bz * pz, fz)
    att_v = jnp.tanh(xf @ wv + bv)
    att_u = jax.nn.sigmoid(xf @ wu + bu)
    att = (att_u * att_v) @ ww.reshape(-1, 1) + bw
    weight = jax.nn.softmax(att.reshape(bz, pz, 1), axis=1)
    weight = weight.reshape(bz, 1, pz)
    feat = jnp.squeeze(weight @ x, axis=1)                   # bmm(weight, x).squeeze(1)
    act = feat
    for i, (w, b) in enumerate(mlp_params):
        act = act @ w + b
        if i < len(mlp_params) - 1:
            act = jnp.maximum(act, 0.0)
    return act


def _linear_init(key, fan_in, fan_out, dtype=jnp.float32):
    """PyTorch nn.Linear default init; weight stored transposed as (in, out)."""
    kw, kb = jax.random.split(key)
    bound = 1.0 / (fan_in ** 0.5)
    w = jax.random.uniform(kw, (fan_in, fan_out), dtype, -bound, bound)
    b = jax.random.uniform(kb, (fan_out,), dtype, -bound, bound)
    return w, b


if __name__ == "__main__":
    # Small shapes consistent with the module: batch=2, 8 instances per bag,
    # in_features=32, MIL_latent_size=16, fc_latent_size=[16], num_classes=1.
    bz, pz = 2, 8
    in_features = 32
    mil_latent = 16
    fc_latent = [16]
    num_classes = 1

    key = jax.random.PRNGKey(0)
    keys = jax.random.split(key, 4 + len(fc_latent) + 1)
    k_x, k_v, k_u, k_w = keys[0], keys[1], keys[2], keys[3]
    k_mlp = keys[4:]

    x = jax.random.normal(k_x, (bz, pz, in_features), dtype=jnp.float32)

    wv, bv = _linear_init(k_v, in_features, mil_latent)
    wu, bu = _linear_init(k_u, in_features, mil_latent)
    ww2d, bw = _linear_init(k_w, mil_latent, 1)
    ww = ww2d.reshape(mil_latent)

    dims = [in_features] + fc_latent + [num_classes]
    mlp_params = tuple(
        _linear_init(k_mlp[i], dims[i], dims[i + 1]) for i in range(len(dims) - 1))

    ref = milnet_reference(x, wv, bv, wu, bu, ww, bw, mlp_params)

    # f32 streaming path: bit-for-bit-ish parity with the f32 reference.
    out_f32 = milnet_forward(x, wv, bv, wu, bu, ww, mlp_params,
                             stream_dtype=jnp.float32)
    out_f32 = jax.block_until_ready(out_f32)
    assert out_f32.shape == (bz, num_classes), out_f32.shape
    assert jnp.allclose(out_f32, ref, atol=1e-3, rtol=5e-3), (
        f"f32 path max abs err {float(jnp.max(jnp.abs(out_f32 - ref)))}")

    # Default bf16-streaming path (halves HBM traffic of a mem-bound kernel).
    out_bf16 = milnet_forward(x, wv, bv, wu, bu, ww, mlp_params)
    out_bf16 = jax.block_until_ready(out_bf16)
    assert out_bf16.shape == (bz, num_classes), out_bf16.shape
    assert jnp.allclose(out_bf16, ref, atol=2e-2, rtol=2e-2), (
        f"bf16 path max abs err {float(jnp.max(jnp.abs(out_bf16 - ref)))}")

    print("KERNEL_OK")
</pallas_src>

<mosaic_0001>
module attributes {stable_mosaic.version = 11 : i64} {
  func.func @kernel(%arg0: i32, %arg1: memref<2x8x32xf32, #tpu.memory_space<vmem>>, %arg2: memref<32x16xf32, #tpu.memory_space<vmem>>, %arg3: memref<1x16xf32, #tpu.memory_space<vmem>>, %arg4: memref<32x16xf32, #tpu.memory_space<vmem>>, %arg5: memref<1x16xf32, #tpu.memory_space<vmem>>, %arg6: memref<16x1xf32, #tpu.memory_space<vmem>>, %arg7: memref<32x16xf32, #tpu.memory_space<vmem>>, %arg8: memref<1x16xf32, #tpu.memory_space<vmem>>, %arg9: memref<16x1xf32, #tpu.memory_space<vmem>>, %arg10: memref<1x1xf32, #tpu.memory_space<vmem>>, %arg11: memref<2x1xf32, #tpu.memory_space<vmem>>) attributes {dimension_semantics = [#tpu.dimension_semantics<parallel>], iteration_bounds = array<i64: 1>, scalar_prefetch = 0 : i64, scratch_operands = 0 : i64, tpu.core_type = #tpu.core_type<tc>, window_params = [{transform_indices = @transform_0, window_bounds = array<i64: 2, 8, 32>}, {pipeline_mode = #tpu.pipeline_mode<synchronous>, transform_indices = @transform_1, window_bounds = array<i64: 32, 16>}, {pipeline_mode = #tpu.pipeline_mode<synchronous>, transform_indices = @transform_2, window_bounds = array<i64: 1, 16>}, {pipeline_mode = #tpu.pipeline_mode<synchronous>, transform_indices = @transform_3, window_bounds = array<i64: 32, 16>}, {pipeline_mode = #tpu.pipeline_mode<synchronous>, transform_indices = @transform_4, window_bounds = array<i64: 1, 16>}, {pipeline_mode = #tpu.pipeline_mode<synchronous>, transform_indices = @transform_5, window_bounds = array<i64: 16, 1>}, {pipeline_mode = #tpu.pipeline_mode<synchronous>, transform_indices = @transform_6, window_bounds = array<i64: 32, 16>}, {pipeline_mode = #tpu.pipeline_mode<synchronous>, transform_indices = @transform_7, window_bounds = array<i64: 1, 16>}, {pipeline_mode = #tpu.pipeline_mode<synchronous>, transform_indices = @transform_8, window_bounds = array<i64: 16, 1>}, {pipeline_mode = #tpu.pipeline_mode<synchronous>, transform_indices = @transform_9, window_bounds = array<i64: 1, 1>}, {transform_indices = @transform_10, window_bounds = array<i64: 2, 1>}]} {
    %c0 = arith.constant 0 : index
    %c0_0 = arith.constant 0 : index
    %c0_1 = arith.constant 0 : index
    %0 = vector.load %arg1[%c0, %c0_0, %c0_1] : memref<2x8x32xf32, #tpu.memory_space<vmem>>, vector<2x8x32xf32>
    %1 = vector.shape_cast %0 : vector<2x8x32xf32> to vector<16x32xf32>
    %c0_2 = arith.constant 0 : index
    %c0_3 = arith.constant 0 : index
    %2 = vector.load %arg2[%c0_2, %c0_3] : memref<32x16xf32, #tpu.memory_space<vmem>>, vector<32x16xf32>
    %cst = arith.constant dense<0.000000e+00> : vector<16x16xf32>
    %3 = tpu.matmul %1, %2, %cst {dimension_numbers = #tpu.dot_dimension_numbers<[1], [0], [0], [1], [0, 0, 1, 1], [], []>} : vector<16x32xf32>, vector<32x16xf32>, vector<16x16xf32> -> vector<16x16xf32>
    %c0_4 = arith.constant 0 : index
    %c0_5 = arith.constant 0 : index
    %4 = vector.load %arg3[%c0_4, %c0_5] : memref<1x16xf32, #tpu.memory_space<vmem>>, vector<1x16xf32>
    %5 = vector.broadcast %4 : vector<1x16xf32> to vector<16x16xf32>
    %6 = arith.addf %3, %5 : vector<16x16xf32>
    %c0_6 = arith.constant 0 : index
    %c0_7 = arith.constant 0 : index
    %7 = vector.load %arg4[%c0_6, %c0_7] : memref<32x16xf32, #tpu.memory_space<vmem>>, vector<32x16xf32>
    %cst_8 = arith.constant dense<0.000000e+00> : vector<16x16xf32>
    %8 = tpu.matmul %1, %7, %cst_8 {dimension_numbers = #tpu.dot_dimension_numbers<[1], [0], [0], [1], [0, 0, 1, 1], [], []>} : vector<16x32xf32>, vector<32x16xf32>, vector<16x16xf32> -> vector<16x16xf32>
    %c0_9 = arith.constant 0 : index
    %c0_10 = arith.constant 0 : index
    %9 = vector.load %arg5[%c0_9, %c0_10] : memref<1x16xf32, #tpu.memory_space<vmem>>, vector<1x16xf32>
    %10 = vector.broadcast %9 : vector<1x16xf32> to vector<16x16xf32>
    %11 = arith.addf %8, %10 : vector<16x16xf32>
    %12 = math.tanh %6 : vector<16x16xf32>
    %13 = arith.negf %11 : vector<16x16xf32>
    %14 = math.exp %13 : vector<16x16xf32>
    %cst_11 = arith.constant 1.000000e+00 : f32
    %15 = vector.broadcast %cst_11 : f32 to vector<16x16xf32>
    %16 = arith.addf %15, %14 : vector<16x16xf32>
    %17 = arith.divf %15, %16 : vector<16x16xf32>
    %18 = arith.mulf %12, %17 : vector<16x16xf32>
    %c0_12 = arith.constant 0 : index
    %c0_13 = arith.constant 0 : index
    %19 = vector.load %arg6[%c0_12, %c0_13] : memref<16x1xf32, #tpu.memory_space<vmem>>, vector<16x1xf32>
    %cst_14 = arith.constant dense<0.000000e+00> : vector<16x1xf32>
    %20 = tpu.matmul %18, %19, %cst_14 {dimension_numbers = #tpu.dot_dimension_numbers<[1], [0], [0], [1], [0, 0, 1, 1], [], []>} : vector<16x16xf32>, vector<16x1xf32>, vector<16x1xf32> -> vector<16x1xf32>
    %21 = vector.shape_cast %20 : vector<16x1xf32> to vector<2x8x1xf32>
    %cst_15 = arith.constant dense<0xFF800000> : vector<2x1xf32>
    %22 = vector.multi_reduction <maximumf>, %21, %cst_15 [1] : vector<2x8x1xf32> to vector<2x1xf32>
    %23 = vector.shape_cast %22 : vector<2x1xf32> to vector<2x1x1xf32>
    %24 = vector.broadcast %23 : vector<2x1x1xf32> to vector<2x8x1xf32>
    %25 = arith.subf %21, %24 : vector<2x8x1xf32>
    %26 = math.exp %25 : vector<2x8x1xf32>
    %cst_16 = arith.constant dense<0.000000e+00> : vector<2x1xf32>
    %27 = vector.multi_reduction <add>, %26, %cst_16 [1] : vector<2x8x1xf32> to vector<2x1xf32>
    %28 = vector.shape_cast %27 : vector<2x1xf32> to vector<2x1x1xf32>
    %29 = tpu.reciprocal %28 {approx = true} : vector<2x1x1xf32> -> vector<2x1x1xf32>
    %30 = vector.broadcast %29 : vector<2x1x1xf32> to vector<2x8x1xf32>
    %31 = arith.mulf %26, %30 : vector<2x8x1xf32>
    %32 = vector.broadcast %31 : vector<2x8x1xf32> to vector<2x8x32xf32>
    %33 = arith.mulf %32, %0 : vector<2x8x32xf32>
    %cst_17 = arith.constant dense<0.000000e+00> : vector<2x32xf32>
    %34 = vector.multi_reduction <add>, %33, %cst_17 [1] : vector<2x8x32xf32> to vector<2x32xf32>
    %c0_18 = arith.constant 0 : index
    %c0_19 = arith.constant 0 : index
    %35 = vector.load %arg7[%c0_18, %c0_19] : memref<32x16xf32, #tpu.memory_space<vmem>>, vector<32x16xf32>
    %cst_20 = arith.constant dense<0.000000e+00> : vector<2x16xf32>
    %36 = tpu.matmul %34, %35, %cst_20 {dimension_numbers = #tpu.dot_dimension_numbers<[1], [0], [0], [1], [0, 0, 1, 1], [], []>} : vector<2x32xf32>, vector<32x16xf32>, vector<2x16xf32> -> vector<2x16xf32>
    %c0_21 = arith.constant 0 : index
    %c0_22 = arith.constant 0 : index
    %37 = vector.load %arg8[%c0_21, %c0_22] : memref<1x16xf32, #tpu.memory_space<vmem>>, vector<1x16xf32>
    %38 = vector.broadcast %37 : vector<1x16xf32> to vector<2x16xf32>
    %39 = arith.addf %36, %38 : vector<2x16xf32>
    %cst_23 = arith.constant 0.000000e+00 : f32
    %40 = vector.broadcast %cst_23 : f32 to vector<2x16xf32>
    %41 = arith.maximumf %39, %40 : vector<2x16xf32>
    %c0_24 = arith.constant 0 : index
    %c0_25 = arith.constant 0 : index
    %42 = vector.load %arg9[%c0_24, %c0_25] : memref<16x1xf32, #tpu.memory_space<vmem>>, vector<16x1xf32>
    %cst_26 = arith.constant dense<0.000000e+00> : vector<2x1xf32>
    %43 = tpu.matmul %41, %42, %cst_26 {dimension_numbers = #tpu.dot_dimension_numbers<[1], [0], [0], [1], [0, 0, 1, 1], [], []>} : vector<2x16xf32>, vector<16x1xf32>, vector<2x1xf32> -> vector<2x1xf32>
    %c0_27 = arith.constant 0 : index
    %c0_28 = arith.constant 0 : index
    %44 = vector.load %arg10[%c0_27, %c0_28] : memref<1x1xf32, #tpu.memory_space<vmem>>, vector<1x1xf32>
    %45 = vector.broadcast %44 : vector<1x1xf32> to vector<2x1xf32>
    %46 = arith.addf %43, %45 : vector<2x1xf32>
    %c0_29 = arith.constant 0 : index
    %c0_30 = arith.constant 0 : index
    %47 = vector.load %arg11[%c0_29, %c0_30] : memref<2x1xf32, #tpu.memory_space<vmem>>, vector<2x1xf32>
    tpu.vector_store %arg11[%c0_29, %c0_30], %46 {strides = array<i32>} : memref<2x1xf32, #tpu.memory_space<vmem>>, vector<2x1xf32>,
    return
  }
  func.func @transform_0(%arg0: i32) -> (i32, i32, i32) {
    %c0_i32 = arith.constant 0 : i32
    %c0_i32_0 = arith.constant 0 : i32
    %c0_i32_1 = arith.constant 0 : i32
    return %arg0, %c0_i32, %c0_i32_0 : i32, i32, i32
  }
  func.func @transform_1(%arg0: i32) -> (i32, i32) {
    %c0_i32 = arith.constant 0 : i32
    %c0_i32_0 = arith.constant 0 : i32
    %c0_i32_1 = arith.constant 0 : i32
    return %c0_i32, %c0_i32_0 : i32, i32
  }
  func.func @transform_2(%arg0: i32) -> (i32, i32) {
    %c0_i32 = arith.constant 0 : i32
    %c0_i32_0 = arith.constant 0 : i32
    %c0_i32_1 = arith.constant 0 : i32
    return %c0_i32, %c0_i32_0 : i32, i32
  }
  func.func @transform_3(%arg0: i32) -> (i32, i32) {
    %c0_i32 = arith.constant 0 : i32
    %c0_i32_0 = arith.constant 0 : i32
    %c0_i32_1 = arith.constant 0 : i32
    return %c0_i32, %c0_i32_0 : i32, i32
  }
  func.func @transform_4(%arg0: i32) -> (i32, i32) {
    %c0_i32 = arith.constant 0 : i32
    %c0_i32_0 = arith.constant 0 : i32
    %c0_i32_1 = arith.constant 0 : i32
    return %c0_i32, %c0_i32_0 : i32, i32
  }
  func.func @transform_5(%arg0: i32) -> (i32, i32) {
    %c0_i32 = arith.constant 0 : i32
    %c0_i32_0 = arith.constant 0 : i32
    %c0_i32_1 = arith.constant 0 : i32
    return %c0_i32, %c0_i32_0 : i32, i32
  }
  func.func @transform_6(%arg0: i32) -> (i32, i32) {
    %c0_i32 = arith.constant 0 : i32
    %c0_i32_0 = arith.constant 0 : i32
    %c0_i32_1 = arith.constant 0 : i32
    return %c0_i32, %c0_i32_0 : i32, i32
  }
  func.func @transform_7(%arg0: i32) -> (i32, i32) {
    %c0_i32 = arith.constant 0 : i32
    %c0_i32_0 = arith.constant 0 : i32
    %c0_i32_1 = arith.constant 0 : i32
    return %c0_i32, %c0_i32_0 : i32, i32
  }
  func.func @transform_8(%arg0: i32) -> (i32, i32) {
    %c0_i32 = arith.constant 0 : i32
    %c0_i32_0 = arith.constant 0 : i32
    %c0_i32_1 = arith.constant 0 : i32
    return %c0_i32, %c0_i32_0 : i32, i32
  }
  func.func @transform_9(%arg0: i32) -> (i32, i32) {
    %c0_i32 = arith.constant 0 : i32
    %c0_i32_0 = arith.constant 0 : i32
    %c0_i32_1 = arith.constant 0 : i32
    return %c0_i32, %c0_i32_0 : i32, i32
  }
  func.func @transform_10(%arg0: i32) -> (i32, i32) {
    %c0_i32 = arith.constant 0 : i32
    %c0_i32_0 = arith.constant 0 : i32
    return %arg0, %c0_i32 : i32, i32
  }
}

</mosaic_0001>

<llo_original>
// kernel: milnet_forward.1
$region0: #{milnet_forward.1}
  #allocation0 [shape = 'u32[]', space=smem, size = 0x4, offset = 0x4, fixed_abs, tag = 'smem constant byte address 0x4 - core index']
  #allocation1 [shape = 'u32[144,128]{1,0:T(1,128)}', space=vmem, size = 0x12000, scoped, tag = 'internal scratch']
  #allocation2 [shape = 'f32[1,1]{1,0:T(1,128)S(1)}', space=vmem, size = 0x200, scoped, tag = 'scoped memory for milnet_forward.1']
  %s0 = inlined_call_operand.vmem [shape: f32[2,8,32], index: 0, kind: input, shape index: {}]
  %s1 = inlined_call_operand.vmem [shape: f32[32,16], index: 1, kind: input, shape index: {}]
  %s2 = inlined_call_operand.vmem [shape: f32[1,16], index: 2, kind: input, shape index: {}]
  %s3 = inlined_call_operand.vmem [shape: f32[32,16], index: 3, kind: input, shape index: {}]
  %s4 = inlined_call_operand.vmem [shape: f32[1,16], index: 4, kind: input, shape index: {}]
  %s5 = inlined_call_operand.vmem [shape: f32[16,1], index: 5, kind: input, shape index: {}]
  %s6 = inlined_call_operand.vmem [shape: f32[32,16], index: 6, kind: input, shape index: {}]
  %s7 = inlined_call_operand.vmem [shape: f32[1,16], index: 7, kind: input, shape index: {}]
  %s8 = inlined_call_operand.vmem [shape: f32[16,1], index: 8, kind: input, shape index: {}]
  %s9 = inlined_call_operand.<no memory space> [shape: f32[1,1], index: 9, kind: input, shape index: {}]
  %s10 = inlined_call_operand.vmem [shape: f32[2,1], index: 10, kind: output, shape index: {}]
  %s11 = sld [smem:[#allocation0]]
  $region50: #{milnet_forward.1} parent=0
    _
  %s13 = ssub.s32 1, %s11
  %s14 = scalar_select 0, %s13, %s11
  %v15 = vstv %s9
  %16 = vst [vmem:[#allocation2] sm:$0x1] %v15
  // Predicated region
  $region2: #{milnet_forward.1} parent=0 // pred_check
    _
  $region3: #{milnet_forward.1} parent=0 // pred_check_branch
    %18 = sbr.rel (0) target = $region5
  $region4: #{milnet_forward.1} parent=0 // pred_region
    _
  $region5: #{milnet_forward.1} parent=0 // pred_fallthru
    _
  // Predicated region
  $region6: #{milnet_forward.1} parent=0 // pred_check
    _
  $region7: #{milnet_forward.1} parent=0 // pred_check_branch
    %20 = sbr.rel (0) target = $region9
  $region8: #{milnet_forward.1} parent=0 // pred_region
    _
  $region9: #{milnet_forward.1} parent=0 // pred_fallthru
    _
  // Predicated region
  $region10: #{milnet_forward.1} parent=0 // pred_check
    _
  $region11: #{milnet_forward.1} parent=0 // pred_check_branch
    %22 = sbr.rel (0) target = $region13
  $region12: #{milnet_forward.1} parent=0 // pred_region
    _
  $region13: #{milnet_forward.1} parent=0 // pred_fallthru
    _
  // Predicated region
  $region14: #{milnet_forward.1} parent=0 // pred_check
    _
  $region15: #{milnet_forward.1} parent=0 // pred_check_branch
    %24 = sbr.rel (0) target = $region17
  $region16: #{milnet_forward.1} parent=0 // pred_region
    _
  $region17: #{milnet_forward.1} parent=0 // pred_fallthru
    _
  // Predicated region
  $region18: #{milnet_forward.1} parent=0 // pred_check
    _
  $region19: #{milnet_forward.1} parent=0 // pred_check_branch
    %26 = sbr.rel (0) target = $region21
  $region20: #{milnet_forward.1} parent=0 // pred_region
    _
  $region21: #{milnet_forward.1} parent=0 // pred_fallthru
    _
  // Predicated region
  $region22: #{milnet_forward.1} parent=0 // pred_check
    _
  $region23: #{milnet_forward.1} parent=0 // pred_check_branch
    %28 = sbr.rel (0) target = $region25
  $region24: #{milnet_forward.1} parent=0 // pred_region
    _
  $region25: #{milnet_forward.1} parent=0 // pred_fallthru
    _
  // Predicated region
  $region26: #{milnet_forward.1} parent=0 // pred_check
    _
  $region27: #{milnet_forward.1} parent=0 // pred_check_branch
    %30 = sbr.rel (0) target = $region29
  $region28: #{milnet_forward.1} parent=0 // pred_region
    _
  $region29: #{milnet_forward.1} parent=0 // pred_fallthru
    _
  // Predicated region
  $region30: #{milnet_forward.1} parent=0 // pred_check
    _
  $region31: #{milnet_forward.1} parent=0 // pred_check_branch
    %32 = sbr.rel (0) target = $region33
  $region32: #{milnet_forward.1} parent=0 // pred_region
    _
  $region33: #{milnet_forward.1} parent=0 // pred_fallthru
    _
  // Predicated region
  $region34: #{milnet_forward.1} parent=0 // pred_check
    _
  $region35: #{milnet_forward.1} parent=0 // pred_check_branch
    %34 = sbr.rel (0) target = $region37
  $region36: #{milnet_forward.1} parent=0 // pred_region
    _
  $region37: #{milnet_forward.1} parent=0 // pred_fallthru
    _
  // Predicated region
  $region38: #{milnet_forward.1} parent=0 // pred_check
    _
  $region39: #{milnet_forward.1} parent=0 // pred_check_branch
    %36 = sbr.rel (0) target = $region41
  $region40: #{milnet_forward.1} parent=0 // pred_region
    _
  $region41: #{milnet_forward.1} parent=0 // pred_fallthru
    _
  %v37 = vld [vmem:[%s0] sm:$0xff]
  %v38 = vld [vmem:[%s0 + $0x8] sm:$0xff]
  %v39 = vld [vmem:[%s1] sm:$0xff]
  %v40 = vld [vmem:[%s1 + $0x8] sm:$0xff]
  %v41 = vld [vmem:[%s1 + $0x10] sm:$0xff]
  %v42 = vld [vmem:[%s1 + $0x18] sm:$0xff]
  %v43 = vld [vmem:[%s2] sm:$0x1]
  %v45 = vlaneseq
  %v46 = vshrl.u32 %v45, 7
  %v47 = vsub.s32 0, %v46
  %v48 = vrot.slane %v43, %v47
  %vm50 = vcmask 261120
  %v52 = vsel %vm50, %v37, 0
  %v55 = vsel %vm50, %v38, 0
  %57 = vmatprep.subr.mxu0 0.0
  %58 = vmatpush1.msra.mxu0 0.0
  %59 = vmatprep.subr.mxu0 0.0
  %60 = vmatpush1.msra.mxu0 0.0
  %61 = vmatprep.subr.mxu0 0.0
  %62 = vmatpush1.msra.mxu0 0.0
  %63 = vmatprep.subr.mxu0 0.0
  %64 = vmatpush1.msra.mxu0 0.0
  %65 = vmatprep.subr.mxu0 0.0
  %66 = vmatpush1.msra.mxu0 0.0
  %67 = vmatprep.subr.mxu0 0.0
  %68 = vmatpush1.msra.mxu0 0.0
  %69 = vmatprep.subr.mxu0 0.0
  %70 = vmatpush1.msra.mxu0 0.0
  %71 = vmatprep.subr.mxu0 0.0
  %72 = vmatpush1.msra.mxu0 0.0
  %73 = vmatprep.subr.mxu0 0.0
  %74 = vmatpush1.msra.mxu0 0.0
  %75 = vmatprep.subr.mxu0 0.0
  %76 = vmatpush1.msra.mxu0 0.0
  %77 = vmatprep.subr.mxu0 0.0
  %78 = vmatpush1.msra.mxu0 0.0
  %79 = vmatprep.subr.mxu0 0.0
  %80 = vmatpush1.msra.mxu0 0.0
  %81 = vmatprep.subr.mxu0 0.0
  %82 = vmatpush1.msra.mxu0 %v42
  %83 = vmatprep.subr.mxu0 0.0
  %84 = vmatpush1.msra.mxu0 %v41
  %85 = vmatprep.subr.mxu0 0.0
  %86 = vmatpush1.msra.mxu0 %v40
  %87 = vmatprep.subr.mxu0 0.0
  %88 = vmatpush1.msra.mxu0 %v39
  %89 = vmatprep.subr.mxu0 0.0
  %90 = vmatpush2.msra.mxu0 0.0
  %91 = vmatprep.subr.mxu0 0.0
  %92 = vmatpush2.msra.mxu0 0.0
  %93 = vmatprep.subr.mxu0 0.0
  %94 = vmatpush2.msra.mxu0 0.0
  %95 = vmatprep.subr.mxu0 0.0
  %96 = vmatpush2.msra.mxu0 0.0
  %97 = vmatprep.subr.mxu0 0.0
  %98 = vmatpush2.msra.mxu0 0.0
  %99 = vmatprep.subr.mxu0 0.0
  %100 = vmatpush2.msra.mxu0 0.0
  %101 = vmatprep.subr.mxu0 0.0
  %102 = vmatpush2.msra.mxu0 0.0
  %103 = vmatprep.subr.mxu0 0.0
  %104 = vmatpush2.msra.mxu0 0.0
  %105 = vmatprep.subr.mxu0 0.0
  %106 = vmatpush2.msra.mxu0 0.0
  %107 = vmatprep.subr.mxu0 0.0
  %108 = vmatpush2.msra.mxu0 0.0
  %109 = vmatprep.subr.mxu0 0.0
  %110 = vmatpush2.msra.mxu0 0.0
  %111 = vmatprep.subr.mxu0 0.0
  %112 = vmatpush2.msra.mxu0 0.0
  %113 = vmatprep.subr.mxu0 0.0
  %114 = vmatpush2.msra.mxu0 0.0
  %115 = vmatprep.subr.mxu0 0.0
  %116 = vmatpush2.msra.mxu0 0.0
  %117 = vmatprep.subr.mxu0 0.0
  %118 = vmatpush2.msra.mxu0 0.0
  %119 = vmatprep.subr.mxu0 0.0
  %120 = vmatpush2.msra.mxu0 0.0
  %121 = vmatprep.mubr.f32.mxu0 0.0
  %122 = vmatmul.mubr.f32.gmra.mxu0 %v52
  %v123 = vpop.f32.mrf.mxu0
  %v124 = vadd.f32 %v48, %v123
  %v125 = vpop.f32.mrf.mxu0
  %126 = vmatprep.mubr.f32.mxu0 0.0
  %127 = vmatmul.mubr.f32.gmra.mxu0 %v55
  %v128 = vpop.f32.mrf.mxu0
  %v129 = vadd.f32 %v48, %v128
  %v130 = vpop.f32.mrf.mxu0
  %131 = vdwg.mxu0
  %v132 = vld [vmem:[%s3] sm:$0xff]
  %v133 = vld [vmem:[%s3 + $0x8] sm:$0xff]
  %v134 = vld [vmem:[%s3 + $0x10] sm:$0xff]
  %v135 = vld [vmem:[%s3 + $0x18] sm:$0xff]
  %v136 = vld [vmem:[%s4] sm:$0x1]
  %v138 = vlaneseq
  %v139 = vshrl.u32 %v138, 7
  %v140 = vsub.s32 0, %v139
  %v141 = vrot.slane %v136, %v140
  %143 = vmatprep.subr.mxu0 0.0
  %144 = vmatpush1.msra.mxu0 0.0
  %145 = vmatprep.subr.mxu0 0.0
  %146 = vmatpush1.msra.mxu0 0.0
  %147 = vmatprep.subr.mxu0 0.0
  %148 = vmatpush1.msra.mxu0 0.0
  %149 = vmatprep.subr.mxu0 0.0
  %150 = vmatpush1.msra.mxu0 0.0
  %151 = vmatprep.subr.mxu0 0.0
  %152 = vmatpush1.msra.mxu0 0.0
  %153 = vmatprep.subr.mxu0 0.0
  %154 = vmatpush1.msra.mxu0 0.0
  %155 = vmatprep.subr.mxu0 0.0
  %156 = vmatpush1.msra.mxu0 0.0
  %157 = vmatprep.subr.mxu0 0.0
  %158 = vmatpush1.msra.mxu0 0.0
  %159 = vmatprep.subr.mxu0 0.0
  %160 = vmatpush1.msra.mxu0 0.0
  %161 = vmatprep.subr.mxu0 0.0
  %162 = vmatpush1.msra.mxu0 0.0
  %163 = vmatprep.subr.mxu0 0.0
  %164 = vmatpush1.msra.mxu0 0.0
  %165 = vmatprep.subr.mxu0 0.0
  %166 = vmatpush1.msra.mxu0 0.0
  %167 = vmatprep.subr.mxu0 0.0
  %168 = vmatpush1.msra.mxu0 %v135
  %169 = vmatprep.subr.mxu0 0.0
  %170 = vmatpush1.msra.mxu0 %v134
  %171 = vmatprep.subr.mxu0 0.0
  %172 = vmatpush1.msra.mxu0 %v133
  %173 = vmatprep.subr.mxu0 0.0
  %174 = vmatpush1.msra.mxu0 %v132
  %175 = vmatprep.subr.mxu0 0.0
  %176 = vmatpush2.msra.mxu0 0.0
  %177 = vmatprep.subr.mxu0 0.0
  %178 = vmatpush2.msra.mxu0 0.0
  %179 = vmatprep.subr.mxu0 0.0
  %180 = vmatpush2.msra.mxu0 0.0
  %181 = vmatprep.subr.mxu0 0.0
  %182 = vmatpush2.msra.mxu0 0.0
  %183 = vmatprep.subr.mxu0 0.0
  %184 = vmatpush2.msra.mxu0 0.0
  %185 = vmatprep.subr.mxu0 0.0
  %186 = vmatpush2.msra.mxu0 0.0
  %187 = vmatprep.subr.mxu0 0.0
  %188 = vmatpush2.msra.mxu0 0.0
  %189 = vmatprep.subr.mxu0 0.0
  %190 = vmatpush2.msra.mxu0 0.0
  %191 = vmatprep.subr.mxu0 0.0
  %192 = vmatpush2.msra.mxu0 0.0
  %193 = vmatprep.subr.mxu0 0.0
  %194 = vmatpush2.msra.mxu0 0.0
  %195 = vmatprep.subr.mxu0 0.0
  %196 = vmatpush2.msra.mxu0 0.0
  %197 = vmatprep.subr.mxu0 0.0
  %198 = vmatpush2.msra.mxu0 0.0
  %199 = vmatprep.subr.mxu0 0.0
  %200 = vmatpush2.msra.mxu0 0.0
  %201 = vmatprep.subr.mxu0 0.0
  %202 = vmatpush2.msra.mxu0 0.0
  %203 = vmatprep.subr.mxu0 0.0
  %204 = vmatpush2.msra.mxu0 0.0
  %205 = vmatprep.subr.mxu0 0.0
  %206 = vmatpush2.msra.mxu0 0.0
  %207 = vmatprep.mubr.f32.mxu0 0.0
  %208 = vmatmul.mubr.f32.gmra.mxu0 %v52
  %v209 = vpop.f32.mrf.mxu0
  %v210 = vadd.f32 %v141, %v209
  %v211 = vpop.f32.mrf.mxu0
  %212 = vmatprep.mubr.f32.mxu0 0.0
  %213 = vmatmul.mubr.f32.gmra.mxu0 %v55
  %v214 = vpop.f32.mrf.mxu0
  %v215 = vadd.f32 %v141, %v214
  %v216 = vpop.f32.mrf.mxu0
  %217 = vdwg.mxu0
  %v218 = vtanh.pop %v124
  %v219 = vtanh.pop %v129
  %v220 = vxor.u32 %v210, 2147483648
  %v221 = vxor.u32 %v215, 2147483648
  %v222 = vmul.f32 %v220, 1.442695
  %v223 = vpow.pop %v222
  %v224 = vmul.f32 %v221, 1.442695
  %v225 = vpow.pop %v224
  %v226 = vadd.f32 %v223, 1.0
  %v227 = vadd.f32 %v225, 1.0
  %v228 = vrcp.pop %v226
  %v229 = vmul.f32 1.0, %v228
  %v230 = vrcp.pop %v227
  %v231 = vmul.f32 1.0, %v230
  %v232 = vmul.f32 %v218, %v229
  %v233 = vmul.f32 %v219, %v231
  %v234 = vld [vmem:[%s5] sm:$0xff]
  %v235 = vld [vmem:[%s5 + $0x8] sm:$0xff]
  %vm236 = vcmask 130048
  %v238 = vsel %vm236, %v232, 0
  %v241 = vsel %vm236, %v233, 0
  %243 = vmatprep.subr.mxu0 0.0
  %244 = vmatpush1.msra.mxu0 0.0
  %245 = vmatprep.subr.mxu0 0.0
  %246 = vmatpush1.msra.mxu0 0.0
  %247 = vmatprep.subr.mxu0 0.0
  %248 = vmatpush1.msra.mxu0 0.0
  %249 = vmatprep.subr.mxu0 0.0
  %250 = vmatpush1.msra.mxu0 0.0
  %251 = vmatprep.subr.mxu0 0.0
  %252 = vmatpush1.msra.mxu0 0.0
  %253 = vmatprep.subr.mxu0 0.0
  %254 = vmatpush1.msra.mxu0 0.0
  %255 = vmatprep.subr.mxu0 0.0
  %256 = vmatpush1.msra.mxu0 0.0
  %257 = vmatprep.subr.mxu0 0.0
  %258 = vmatpush1.msra.mxu0 0.0
  %259 = vmatprep.subr.mxu0 0.0
  %260 = vmatpush1.msra.mxu0 0.0
  %261 = vmatprep.subr.mxu0 0.0
  %262 = vmatpush1.msra.mxu0 0.0
  %263 = vmatprep.subr.mxu0 0.0
  %264 = vmatpush1.msra.mxu0 0.0
  %265 = vmatprep.subr.mxu0 0.0
  %266 = vmatpush1.msra.mxu0 0.0
  %267 = vmatprep.subr.mxu0 0.0
  %268 = vmatpush1.msra.mxu0 0.0
  %269 = vmatprep.subr.mxu0 0.0
  %270 = vmatpush1.msra.mxu0 0.0
  %271 = vmatprep.subr.mxu0 0.0
  %272 = vmatpush1.msra.mxu0 %v235
  %273 = vmatprep.subr.mxu0 0.0
  %274 = vmatpush1.msra.mxu0 %v234
  %275 = vmatprep.subr.mxu0 0.0
  %276 = vmatpush2.msra.mxu0 0.0
  %277 = vmatprep.subr.mxu0 0.0
  %278 = vmatpush2.msra.mxu0 0.0
  %279 = vmatprep.subr.mxu0 0.0
  %280 = vmatpush2.msra.mxu0 0.0
  %281 = vmatprep.subr.mxu0 0.0
  %282 = vmatpush2.msra.mxu0 0.0
  %283 = vmatprep.subr.mxu0 0.0
  %284 = vmatpush2.msra.mxu0 0.0
  %285 = vmatprep.subr.mxu0 0.0
  %286 = vmatpush2.msra.mxu0 0.0
  %287 = vmatprep.subr.mxu0 0.0
  %288 = vmatpush2.msra.mxu0 0.0
  %289 = vmatprep.subr.mxu0 0.0
  %290 = vmatpush2.msra.mxu0 0.0
  %291 = vmatprep.subr.mxu0 0.0
  %292 = vmatpush2.msra.mxu0 0.0
  %293 = vmatprep.subr.mxu0 0.0
  %294 = vmatpush2.msra.mxu0 0.0
  %295 = vmatprep.subr.mxu0 0.0
  %296 = vmatpush2.msra.mxu0 0.0
  %297 = vmatprep.subr.mxu0 0.0
  %298 = vmatpush2.msra.mxu0 0.0
  %299 = vmatprep.subr.mxu0 0.0
  %300 = vmatpush2.msra.mxu0 0.0
  %301 = vmatprep.subr.mxu0 0.0
  %302 = vmatpush2.msra.mxu0 0.0
  %303 = vmatprep.subr.mxu0 0.0
  %304 = vmatpush2.msra.mxu0 0.0
  %305 = vmatprep.subr.mxu0 0.0
  %306 = vmatpush2.msra.mxu0 0.0
  %307 = vmatprep.mubr.f32.mxu0 0.0
  %308 = vmatmul.mubr.f32.gmra.mxu0 %v238
  %v309 = vpop.f32.mrf.mxu0
  %v310 = vadd.f32 0.0, %v309
  %v311 = vpop.f32.mrf.mxu0
  %312 = vmatprep.mubr.f32.mxu0 0.0
  %313 = vmatmul.mubr.f32.gmra.mxu0 %v241
  %v314 = vpop.f32.mrf.mxu0
  %v315 = vadd.f32 0.0, %v314
  %v316 = vpop.f32.mrf.mxu0
  %317 = vdwg.mxu0
  %vm318 = vcmask 7168
  %v319 = vsel %vm318, %v310, -inf
  %v320 = vrot.slane %v319, 4
  %v321 = vmax.f32 %v319, %v320
  %v322 = vrot.slane %v321, 2
  %v323 = vmax.f32 %v321, %v322
  %v324 = vrot.slane %v323, 1
  %v325 = vmax.f32 %v323, %v324
  %v326 = vsel %vm318, %v315, -inf
  %v327 = vrot.slane %v326, 4
  %v328 = vmax.f32 %v326, %v327
  %v329 = vrot.slane %v328, 2
  %v330 = vmax.f32 %v328, %v329
  %v331 = vrot.slane %v330, 1
  %v332 = vmax.f32 %v330, %v331
  %v333 = vsub.f32 %v310, %v325
  %v334 = vsub.f32 %v315, %v332
  %v335 = vmul.f32 %v333, 1.442695
  %v336 = vpow.pop %v335
  %v337 = vmul.f32 %v334, 1.442695
  %v338 = vpow.pop %v337
  %v339 = vsel %vm318, %v336, 0.0
  %v340 = vrot.slane %v339, 4
  %v341 = vadd.f32 %v339, %v340
  %v342 = vrot.slane %v341, 2
  %v343 = vadd.f32 %v341, %v342
  %v344 = vrot.slane %v343, 1
  %v345 = vadd.f32 %v343, %v344
  %v346 = vsel %vm318, %v338, 0.0
  %v347 = vrot.slane %v346, 4
  %v348 = vadd.f32 %v346, %v347
  %v349 = vrot.slane %v348, 2
  %v350 = vadd.f32 %v348, %v349
  %v351 = vrot.slane %v350, 1
  %v352 = vadd.f32 %v350, %v351
  %v353 = vrcp.pop %v345
  %v354 = vrcp.pop %v352
  %v355 = vmul.f32 %v336, %v353
  %v356 = vmul.f32 %v338, %v354
  %358 = vset.pattern.permute.xlu0 0
  %359 = vperm.xlu0 %358, %v355
  %v360 = vpop.permute.xlu0 %359
  %363 = vset.pattern.permute.xlu0 0
  %364 = vperm.xlu0 %363, %v356
  %v365 = vpop.permute.xlu0 %364
  %v367 = vmul.f32 %v360, %v37
  %v368 = vmul.f32 %v365, %v38
  %v369 = vsel %vm50, %v367, 0.0
  %v370 = vrot.slane %v369, 4
  %v371 = vadd.f32 %v369, %v370
  %v372 = vrot.slane %v371, 2
  %v373 = vadd.f32 %v371, %v372
  %v374 = vrot.slane %v373, 1
  %v375 = vadd.f32 %v373, %v374
  %v376 = vsel %vm50, %v368, 0.0
  %v377 = vrot.slane %v376, 4
  %v378 = vadd.f32 %v376, %v377
  %v379 = vrot.slane %v378, 2
  %v380 = vadd.f32 %v378, %v379
  %v381 = vrot.slane %v380, 1
  %v382 = vadd.f32 %v380, %v381
  %v383 = vld [vmem:[%s6] sm:$0xff]
  %v384 = vld [vmem:[%s6 + $0x8] sm:$0xff]
  %v385 = vld [vmem:[%s6 + $0x10] sm:$0xff]
  %v386 = vld [vmem:[%s6 + $0x18] sm:$0xff]
  %v387 = vld [vmem:[%s7] sm:$0x1]
  %v389 = vlaneseq
  %v390 = vshrl.u32 %v389, 7
  %v391 = vsub.s32 0, %v390
  %v392 = vrot.slane %v387, %v391
  %vm396 = vcmask 1041409
  %v397 = vsel %vm396, %v382, %v375
  %v398 = vsel %vm50, %v397, 0
  %400 = vmatprep.subr.mxu0 0.0
  %401 = vmatpush1.msra.mxu0 0.0
  %402 = vmatprep.subr.mxu0 0.0
  %403 = vmatpush1.msra.mxu0 0.0
  %404 = vmatprep.subr.mxu0 0.0
  %405 = vmatpush1.msra.mxu0 0.0
  %406 = vmatprep.subr.mxu0 0.0
  %407 = vmatpush1.msra.mxu0 0.0
  %408 = vmatprep.subr.mxu0 0.0
  %409 = vmatpush1.msra.mxu0 0.0
  %410 = vmatprep.subr.mxu0 0.0
  %411 = vmatpush1.msra.mxu0 0.0
  %412 = vmatprep.subr.mxu0 0.0
  %413 = vmatpush1.msra.mxu0 0.0
  %414 = vmatprep.subr.mxu0 0.0
  %415 = vmatpush1.msra.mxu0 0.0
  %416 = vmatprep.subr.mxu0 0.0
  %417 = vmatpush1.msra.mxu0 0.0
  %418 = vmatprep.subr.mxu0 0.0
  %419 = vmatpush1.msra.mxu0 0.0
  %420 = vmatprep.subr.mxu0 0.0
  %421 = vmatpush1.msra.mxu0 0.0
  %422 = vmatprep.subr.mxu0 0.0
  %423 = vmatpush1.msra.mxu0 0.0
  %424 = vmatprep.subr.mxu0 0.0
  %425 = vmatpush1.msra.mxu0 %v386
  %426 = vmatprep.subr.mxu0 0.0
  %427 = vmatpush1.msra.mxu0 %v385
  %428 = vmatprep.subr.mxu0 0.0
  %429 = vmatpush1.msra.mxu0 %v384
  %430 = vmatprep.subr.mxu0 0.0
  %431 = vmatpush1.msra.mxu0 %v383
  %432 = vmatprep.subr.mxu0 0.0
  %433 = vmatpush2.msra.mxu0 0.0
  %434 = vmatprep.subr.mxu0 0.0
  %435 = vmatpush2.msra.mxu0 0.0
  %436 = vmatprep.subr.mxu0 0.0
  %437 = vmatpush2.msra.mxu0 0.0
  %438 = vmatprep.subr.mxu0 0.0
  %439 = vmatpush2.msra.mxu0 0.0
  %440 = vmatprep.subr.mxu0 0.0
  %441 = vmatpush2.msra.mxu0 0.0
  %442 = vmatprep.subr.mxu0 0.0
  %443 = vmatpush2.msra.mxu0 0.0
  %444 = vmatprep.subr.mxu0 0.0
  %445 = vmatpush2.msra.mxu0 0.0
  %446 = vmatprep.subr.mxu0 0.0
  %447 = vmatpush2.msra.mxu0 0.0
  %448 = vmatprep.subr.mxu0 0.0
  %449 = vmatpush2.msra.mxu0 0.0
  %450 = vmatprep.subr.mxu0 0.0
  %451 = vmatpush2.msra.mxu0 0.0
  %452 = vmatprep.subr.mxu0 0.0
  %453 = vmatpush2.msra.mxu0 0.0
  %454 = vmatprep.subr.mxu0 0.0
  %455 = vmatpush2.msra.mxu0 0.0
  %456 = vmatprep.subr.mxu0 0.0
  %457 = vmatpush2.msra.mxu0 0.0
  %458 = vmatprep.subr.mxu0 0.0
  %459 = vmatpush2.msra.mxu0 0.0
  %460 = vmatprep.subr.mxu0 0.0
  %461 = vmatpush2.msra.mxu0 0.0
  %462 = vmatprep.subr.mxu0 0.0
  %463 = vmatpush2.msra.mxu0 0.0
  %464 = vmatprep.mubr.f32.mxu0 0.0
  %465 = vmatmul.mubr.f32.gmra.mxu0 %v398
  %v466 = vpop.f32.mrf.mxu0
  %v467 = vadd.f32 %v392, %v466
  %v468 = vpop.f32.mrf.mxu0
  %469 = vdwg.mxu0
  %v470 = vmax.f32 %v467, 0.0
  %v471 = vld [vmem:[%s8] sm:$0xff]
  %v472 = vld [vmem:[%s8 + $0x8] sm:$0xff]
  %v473 = vld [vmem:[#allocation2] sm:$0x1]
  %v475 = vlaneseq
  %v476 = vshrl.u32 %v475, 7
  %v477 = vsub.s32 0, %v476
  %v478 = vrot.slane %v473, %v477
  %v481 = vsel %vm236, %v470, 0
  %483 = vmatprep.subr.mxu0 0.0
  %484 = vmatpush1.msra.mxu0 0.0
  %485 = vmatprep.subr.mxu0 0.0
  %486 = vmatpush1.msra.mxu0 0.0
  %487 = vmatprep.subr.mxu0 0.0
  %488 = vmatpush1.msra.mxu0 0.0
  %489 = vmatprep.subr.mxu0 0.0
  %490 = vmatpush1.msra.mxu0 0.0
  %491 = vmatprep.subr.mxu0 0.0
  %492 = vmatpush1.msra.mxu0 0.0
  %493 = vmatprep.subr.mxu0 0.0
  %494 = vmatpush1.msra.mxu0 0.0
  %495 = vmatprep.subr.mxu0 0.0
  %496 = vmatpush1.msra.mxu0 0.0
  %497 = vmatprep.subr.mxu0 0.0
  %498 = vmatpush1.msra.mxu0 0.0
  %499 = vmatprep.subr.mxu0 0.0
  %500 = vmatpush1.msra.mxu0 0.0
  %501 = vmatprep.subr.mxu0 0.0
  %502 = vmatpush1.msra.mxu0 0.0
  %503 = vmatprep.subr.mxu0 0.0
  %504 = vmatpush1.msra.mxu0 0.0
  %505 = vmatprep.subr.mxu0 0.0
  %506 = vmatpush1.msra.mxu0 0.0
  %507 = vmatprep.subr.mxu0 0.0
  %508 = vmatpush1.msra.mxu0 0.0
  %509 = vmatprep.subr.mxu0 0.0
  %510 = vmatpush1.msra.mxu0 0.0
  %511 = vmatprep.subr.mxu0 0.0
  %512 = vmatpush1.msra.mxu0 %v472
  %513 = vmatprep.subr.mxu0 0.0
  %514 = vmatpush1.msra.mxu0 %v471
  %515 = vmatprep.subr.mxu0 0.0
  %516 = vmatpush2.msra.mxu0 0.0
  %517 = vmatprep.subr.mxu0 0.0
  %518 = vmatpush2.msra.mxu0 0.0
  %519 = vmatprep.subr.mxu0 0.0
  %520 = vmatpush2.msra.mxu0 0.0
  %521 = vmatprep.subr.mxu0 0.0
  %522 = vmatpush2.msra.mxu0 0.0
  %523 = vmatprep.subr.mxu0 0.0
  %524 = vmatpush2.msra.mxu0 0.0
  %525 = vmatprep.subr.mxu0 0.0
  %526 = vmatpush2.msra.mxu0 0.0
  %527 = vmatprep.subr.mxu0 0.0
  %528 = vmatpush2.msra.mxu0 0.0
  %529 = vmatprep.subr.mxu0 0.0
  %530 = vmatpush2.msra.mxu0 0.0
  %531 = vmatprep.subr.mxu0 0.0
  %532 = vmatpush2.msra.mxu0 0.0
  %533 = vmatprep.subr.mxu0 0.0
  %534 = vmatpush2.msra.mxu0 0.0
  %535 = vmatprep.subr.mxu0 0.0
  %536 = vmatpush2.msra.mxu0 0.0
  %537 = vmatprep.subr.mxu0 0.0
  %538 = vmatpush2.msra.mxu0 0.0
  %539 = vmatprep.subr.mxu0 0.0
  %540 = vmatpush2.msra.mxu0 0.0
  %541 = vmatprep.subr.mxu0 0.0
  %542 = vmatpush2.msra.mxu0 0.0
  %543 = vmatprep.subr.mxu0 0.0
  %544 = vmatpush2.msra.mxu0 0.0
  %545 = vmatprep.subr.mxu0 0.0
  %546 = vmatpush2.msra.mxu0 0.0
  %547 = vmatprep.mubr.f32.mxu0 0.0
  %548 = vmatmul.mubr.f32.gmra.mxu0 %v481
  %v549 = vpop.f32.mrf.mxu0
  %v550 = vadd.f32 %v478, %v549
  %v551 = vpop.f32.mrf.mxu0
  %552 = vdwg.mxu0
  %vm553 = vcmask 1024
  %554 = vst.msk [vmem:[%s10] sm:$0x3] %vm553, %v550
  // Predicated region
  $region42: #{milnet_forward.1} parent=0 // pred_check
    _
  $region43: #{milnet_forward.1} parent=0 // pred_check_branch
    %556 = sbr.rel (0) target = $region45
  $region44: #{milnet_forward.1} parent=0 // pred_region
    _
  $region45: #{milnet_forward.1} parent=0 // pred_fallthru
    _
  // Predicated region
  $region46: #{milnet_forward.1} parent=0 // pred_check
    _
  $region47: #{milnet_forward.1} parent=0 // pred_check_branch
    %558 = sbr.rel (0) target = $region49
  $region48: #{milnet_forward.1} parent=0 // pred_region
    _
  $region49: #{milnet_forward.1} parent=0 // pred_fallthru
    _

</llo_original>
